<compile_context>
chip_gen: v7x
topology: tpu7x:2x2x1
jax: 0.10.0
libtpu: 0.0.40
codegen_flags: <defaults>
</compile_context>

<pallas_src>
import functools

import jax
import jax.numpy as jnp
from jax.experimental import pallas as pl
from jax.experimental.pallas import tpu as pltpu


def _round_up(x, m):
    return ((x + m - 1) // m) * m


def mlp_kernel(x_ref, w1_ref, b1_ref, w2_ref, b2_ref, o_ref):
    # First linear: bf16 operands on the MXU, f32 accumulation.
    h = jnp.dot(x_ref[...], w1_ref[...], preferred_element_type=jnp.float32)
    # Bias + ReLU in f32 on the VPU (v5e has no bf16 VALU).
    h = jnp.maximum(h + b1_ref[...], 0.0)
    # Second linear: cast hidden to the matmul dtype, accumulate in f32.
    y = jnp.dot(h.astype(w2_ref.dtype), w2_ref[...],
                preferred_element_type=jnp.float32)
    o_ref[...] = (y + b2_ref[...]).astype(o_ref.dtype)


@functools.partial(jax.jit, static_argnames=("block_b", "compute_dtype"))
def mlp_forward(x, w1, b1, w2, b2, *, block_b=1024, compute_dtype=jnp.bfloat16):
    """x: (B, D_in); w1: (D_in, H); b1: (H,) or (1, H); w2: (H, D_out); b2: (D_out,) or (1, D_out)."""
    B, d_in = x.shape
    hidden = w1.shape[1]
    d_out = w2.shape[1]
    out_dtype = x.dtype

    # ---- lane-dense feature padding (hidden / d_out -> multiples of 128) ----
    hid_p = _round_up(hidden, 128)
    dout_p = _round_up(d_out, 128)

    # ---- batch tiling: multiple of 8, >=2 grid steps when the batch allows ----
    b_pad8 = _round_up(B, 8)
    if block_b >= b_pad8:
        # Whole batch fits one tile: split in two (if possible) so the pipeline
        # / megacore have something to overlap, otherwise take the whole batch.
        block_b = _round_up(b_pad8 // 2, 8) if b_pad8 >= 16 else b_pad8
    else:
        block_b = _round_up(block_b, 8)
    B_p = _round_up(b_pad8, block_b)
    grid = (B_p // block_b,)

    # ---- pad + cast at the pallas_call boundary (zero padding is exact) ----
    xp = jnp.pad(x, ((0, B_p - B), (0, 0))).astype(compute_dtype)
    w1p = jnp.pad(w1, ((0, 0), (0, hid_p - hidden))).astype(compute_dtype)
    b1p = jnp.pad(jnp.reshape(b1, (1, hidden)),
                  ((0, 0), (0, hid_p - hidden))).astype(jnp.float32)
    w2p = jnp.pad(w2, ((0, hid_p - hidden), (0, dout_p - d_out))).astype(compute_dtype)
    b2p = jnp.pad(jnp.reshape(b2, (1, d_out)),
                  ((0, 0), (0, dout_p - d_out))).astype(jnp.float32)

    cbytes = jnp.dtype(compute_dtype).itemsize
    obytes = jnp.dtype(out_dtype).itemsize

    # VMEM footprint: double-buffered x/out tiles + resident weights/biases
    # + f32 intermediates for one tile.
    vmem_bytes = (
        2 * block_b * d_in * cbytes                       # x tiles (double-buffered)
        + 2 * block_b * dout_p * obytes                   # out tiles (double-buffered)
        + 2 * (d_in * hid_p + hid_p * dout_p) * cbytes    # W1, W2 (double-buffered)
        + 2 * (hid_p + dout_p) * 4                        # biases
        + block_b * (hid_p + dout_p) * 4                  # f32 h / y temporaries
    )
    # Explicit scoped-VMEM limit; stay below v7x's 64 MiB physical VMEM.
    vmem_limit = int(min(max(int(vmem_bytes * 1.5) + (2 << 20), 16 << 20), 60 << 20))

    cost = pl.CostEstimate(
        flops=2 * B_p * (d_in * hid_p + hid_p * dout_p),
        transcendentals=0,
        bytes_accessed=(
            B_p * d_in * cbytes                            # x
            + (d_in * hid_p + hid_p * dout_p) * cbytes     # weights
            + (hid_p + dout_p) * 4                         # biases
            + B_p * dout_p * obytes                        # out
        ),
    )

    out = pl.pallas_call(
        mlp_kernel,
        out_shape=jax.ShapeDtypeStruct((B_p, dout_p), out_dtype),
        grid_spec=pltpu.PrefetchScalarGridSpec(
            num_scalar_prefetch=0,
            grid=grid,
            in_specs=[
                pl.BlockSpec((block_b, d_in), lambda i: (i, 0)),   # x tile over batch
                pl.BlockSpec((d_in, hid_p), lambda i: (0, 0)),     # W1 resident
                pl.BlockSpec((1, hid_p), lambda i: (0, 0)),        # b1 resident
                pl.BlockSpec((hid_p, dout_p), lambda i: (0, 0)),   # W2 resident
                pl.BlockSpec((1, dout_p), lambda i: (0, 0)),       # b2 resident
            ],
            out_specs=pl.BlockSpec((block_b, dout_p), lambda i: (i, 0)),
        ),
        compiler_params=pltpu.CompilerParams(
            dimension_semantics=("parallel",),
            vmem_limit_bytes=vmem_limit,
        ),
        cost_estimate=cost,
    )(xp, w1p, b1p, w2p, b2p)

    # Slice off batch / lane padding.
    return out[:B, :d_out]


def init_mlp_params(key, input_dims, output_dims, hidden=32, dtype=jnp.float32):
    """Deterministic init mimicking PyTorch Linear default (uniform +-1/sqrt(fan_in))."""
    k1, k2, k3, k4 = jax.random.split(key, 4)
    lim1 = 1.0 / jnp.sqrt(jnp.array(input_dims, dtype))
    lim2 = 1.0 / jnp.sqrt(jnp.array(hidden, dtype))
    w1 = jax.random.uniform(k1, (input_dims, hidden), dtype, -lim1, lim1)
    b1 = jax.random.uniform(k2, (1, hidden), dtype, -lim1, lim1)
    w2 = jax.random.uniform(k3, (hidden, output_dims), dtype, -lim2, lim2)
    b2 = jax.random.uniform(k4, (1, output_dims), dtype, -lim2, lim2)
    return w1, b1, w2, b2


def _reference(x, w1, b1, w2, b2):
    return jnp.maximum(x @ w1 + jnp.reshape(b1, (1, -1)), 0.0) @ w2 + jnp.reshape(b2, (1, -1))


if __name__ == "__main__":
    input_dims = 16
    output_dims = 8

    key = jax.random.PRNGKey(0)
    kx, kp, kx2 = jax.random.split(key, 3)
    w1, b1, w2, b2 = init_mlp_params(kp, input_dims, output_dims)

    # Case 1: tiny batch (single tile, single grid step).
    batch = 8
    x = jax.random.normal(kx, (batch, input_dims), jnp.float32)
    out = jax.block_until_ready(mlp_forward(x, w1, b1, w2, b2))
    ref = _reference(x, w1, b1, w2, b2)
    assert out.shape == (batch, output_dims)
    # Tolerance loosened because matmul operands are bf16 (f32 accumulation).
    assert jnp.allclose(out, ref, atol=3e-2, rtol=3e-2), (
        f"case1 mismatch, max abs diff {jnp.max(jnp.abs(out - ref))}")

    # Case 2: non-multiple-of-8 batch with an explicit small tile, exercising
    # batch padding and a multi-step pipelined grid.
    batch2 = 45
    x2 = jax.random.normal(kx2, (batch2, input_dims), jnp.float32)
    out2 = jax.block_until_ready(mlp_forward(x2, w1, b1, w2, b2, block_b=16))
    ref2 = _reference(x2, w1, b1, w2, b2)
    assert out2.shape == (batch2, output_dims)
    assert jnp.allclose(out2, ref2, atol=3e-2, rtol=3e-2), (
        f"case2 mismatch, max abs diff {jnp.max(jnp.abs(out2 - ref2))}")

    print("KERNEL_OK")
</pallas_src>

<mosaic_0001>
module attributes {stable_mosaic.version = 11 : i64} {
  func.func @mlp_kernel(%arg0: i32, %arg1: memref<8x16xbf16, #tpu.memory_space<vmem>>, %arg2: memref<16x128xbf16, #tpu.memory_space<vmem>>, %arg3: memref<1x128xf32, #tpu.memory_space<vmem>>, %arg4: memref<128x128xbf16, #tpu.memory_space<vmem>>, %arg5: memref<1x128xf32, #tpu.memory_space<vmem>>, %arg6: memref<8x128xf32, #tpu.memory_space<vmem>>) attributes {dimension_semantics = [#tpu.dimension_semantics<parallel>], iteration_bounds = array<i64: 1>, scalar_prefetch = 0 : i64, scratch_operands = 0 : i64, tpu.core_type = #tpu.core_type<tc>, window_params = [{transform_indices = @transform_0, window_bounds = array<i64: 8, 16>}, {pipeline_mode = #tpu.pipeline_mode<synchronous>, transform_indices = @transform_1, window_bounds = array<i64: 16, 128>}, {pipeline_mode = #tpu.pipeline_mode<synchronous>, transform_indices = @transform_2, window_bounds = array<i64: 1, 128>}, {pipeline_mode = #tpu.pipeline_mode<synchronous>, transform_indices = @transform_3, window_bounds = array<i64: 128, 128>}, {pipeline_mode = #tpu.pipeline_mode<synchronous>, transform_indices = @transform_4, window_bounds = array<i64: 1, 128>}, {transform_indices = @transform_5, window_bounds = array<i64: 8, 128>}]} {
    %c0 = arith.constant 0 : index
    %c0_0 = arith.constant 0 : index
    %0 = vector.load %arg1[%c0, %c0_0] : memref<8x16xbf16, #tpu.memory_space<vmem>>, vector<8x16xbf16>
    %c0_1 = arith.constant 0 : index
    %c0_2 = arith.constant 0 : index
    %1 = vector.load %arg2[%c0_1, %c0_2] : memref<16x128xbf16, #tpu.memory_space<vmem>>, vector<16x128xbf16>
    %cst = arith.constant dense<0.000000e+00> : vector<8x128xf32>
    %2 = tpu.matmul %0, %1, %cst {dimension_numbers = #tpu.dot_dimension_numbers<[1], [0], [0], [1], [0, 0, 1, 1], [], []>} : vector<8x16xbf16>, vector<16x128xbf16>, vector<8x128xf32> -> vector<8x128xf32>
    %c0_3 = arith.constant 0 : index
    %c0_4 = arith.constant 0 : index
    %3 = vector.load %arg3[%c0_3, %c0_4] : memref<1x128xf32, #tpu.memory_space<vmem>>, vector<1x128xf32>
    %4 = vector.broadcast %3 : vector<1x128xf32> to vector<8x128xf32>
    %5 = arith.addf %2, %4 : vector<8x128xf32>
    %cst_5 = arith.constant 0.000000e+00 : f32
    %6 = vector.broadcast %cst_5 : f32 to vector<8x128xf32>
    %7 = arith.maximumf %5, %6 : vector<8x128xf32>
    %8 = arith.truncf %7 : vector<8x128xf32> to vector<8x128xbf16>
    %c0_6 = arith.constant 0 : index
    %c0_7 = arith.constant 0 : index
    %9 = vector.load %arg4[%c0_6, %c0_7] : memref<128x128xbf16, #tpu.memory_space<vmem>>, vector<128x128xbf16>
    %cst_8 = arith.constant dense<0.000000e+00> : vector<8x128xf32>
    %10 = tpu.matmul %8, %9, %cst_8 {dimension_numbers = #tpu.dot_dimension_numbers<[1], [0], [0], [1], [0, 0, 1, 1], [], []>} : vector<8x128xbf16>, vector<128x128xbf16>, vector<8x128xf32> -> vector<8x128xf32>
    %c0_9 = arith.constant 0 : index
    %c0_10 = arith.constant 0 : index
    %11 = vector.load %arg5[%c0_9, %c0_10] : memref<1x128xf32, #tpu.memory_space<vmem>>, vector<1x128xf32>
    %12 = vector.broadcast %11 : vector<1x128xf32> to vector<8x128xf32>
    %13 = arith.addf %10, %12 : vector<8x128xf32>
    %c0_11 = arith.constant 0 : index
    %c0_12 = arith.constant 0 : index
    %14 = vector.load %arg6[%c0_11, %c0_12] : memref<8x128xf32, #tpu.memory_space<vmem>>, vector<8x128xf32>
    tpu.vector_store %arg6[%c0_11, %c0_12], %13 {strides = array<i32>} : memref<8x128xf32, #tpu.memory_space<vmem>>, vector<8x128xf32>,
    return
  }
  func.func @transform_0(%arg0: i32) -> (i32, i32) {
    %c0_i32 = arith.constant 0 : i32
    %c0_i32_0 = arith.constant 0 : i32
    return %arg0, %c0_i32 : i32, i32
  }
  func.func @transform_1(%arg0: i32) -> (i32, i32) {
    %c0_i32 = arith.constant 0 : i32
    %c0_i32_0 = arith.constant 0 : i32
    %c0_i32_1 = arith.constant 0 : i32
    return %c0_i32, %c0_i32_0 : i32, i32
  }
  func.func @transform_2(%arg0: i32) -> (i32, i32) {
    %c0_i32 = arith.constant 0 : i32
    %c0_i32_0 = arith.constant 0 : i32
    %c0_i32_1 = arith.constant 0 : i32
    return %c0_i32, %c0_i32_0 : i32, i32
  }
  func.func @transform_3(%arg0: i32) -> (i32, i32) {
    %c0_i32 = arith.constant 0 : i32
    %c0_i32_0 = arith.constant 0 : i32
    %c0_i32_1 = arith.constant 0 : i32
    return %c0_i32, %c0_i32_0 : i32, i32
  }
  func.func @transform_4(%arg0: i32) -> (i32, i32) {
    %c0_i32 = arith.constant 0 : i32
    %c0_i32_0 = arith.constant 0 : i32
    %c0_i32_1 = arith.constant 0 : i32
    return %c0_i32, %c0_i32_0 : i32, i32
  }
  func.func @transform_5(%arg0: i32) -> (i32, i32) {
    %c0_i32 = arith.constant 0 : i32
    %c0_i32_0 = arith.constant 0 : i32
    return %arg0, %c0_i32 : i32, i32
  }
}

</mosaic_0001>

<llo_original>
// kernel: mlp_forward.1
$region0: #{mlp_forward.1}
  #allocation0 [shape = 'u32[]', space=smem, size = 0x4, offset = 0x4, fixed_abs, tag = 'smem constant byte address 0x4 - core index']
  #allocation1 [shape = 'u32[144,128]{1,0:T(1,128)}', space=vmem, size = 0x12000, scoped, tag = 'internal scratch']
  %s0 = inlined_call_operand.vmem [shape: bf16[8,16], index: 0, kind: input, shape index: {}]
  %s1 = inlined_call_operand.vmem [shape: bf16[16,128], index: 1, kind: input, shape index: {}]
  %s2 = inlined_call_operand.vmem [shape: f32[1,128], index: 2, kind: input, shape index: {}]
  %s3 = inlined_call_operand.vmem [shape: bf16[128,128], index: 3, kind: input, shape index: {}]
  %s4 = inlined_call_operand.vmem [shape: f32[1,128], index: 4, kind: input, shape index: {}]
  %s5 = inlined_call_operand.hbm [shape: f32[8,128], index: 5, kind: output, shape index: {}]
  %s6 = sld [smem:[#allocation0]]
  $region30: #{mlp_forward.1} parent=0
    _
  %s8 = ssub.s32 1, %s6
  %s9 = scalar_select 0, %s8, %s6
  $region1: #{mlp_forward.1} parent=0
    #allocation2 [shape = 'u8[4096]{0}', space=vmem, size = 0x1000, scoped, tag = 'output window, operand 0, single buffered']
    #allocation3 [shape = 's32[1]{0}', space=sflag, size = 0x4, scoped, tag = 'scoped memory for mlp_forward.1']
    %10 = vsyncpa [#allocation3], 0
    // Predicated region
    $region2: #{mlp_forward.1} parent=1 // pred_check
      _
    $region3: #{mlp_forward.1} parent=1 // pred_check_branch
      %12 = sbr.rel (0) target = $region5
    $region4: #{mlp_forward.1} parent=1 // pred_region
      _
    $region5: #{mlp_forward.1} parent=1 // pred_fallthru
      _
    // Predicated region
    $region6: #{mlp_forward.1} parent=1 // pred_check
      _
    $region7: #{mlp_forward.1} parent=1 // pred_check_branch
      %14 = sbr.rel (0) target = $region9
    $region8: #{mlp_forward.1} parent=1 // pred_region
      _
    $region9: #{mlp_forward.1} parent=1 // pred_fallthru
      _
    // Predicated region
    $region10: #{mlp_forward.1} parent=1 // pred_check
      _
    $region11: #{mlp_forward.1} parent=1 // pred_check_branch
      %16 = sbr.rel (0) target = $region13
    $region12: #{mlp_forward.1} parent=1 // pred_region
      _
    $region13: #{mlp_forward.1} parent=1 // pred_fallthru
      _
    // Predicated region
    $region14: #{mlp_forward.1} parent=1 // pred_check
      _
    $region15: #{mlp_forward.1} parent=1 // pred_check_branch
      %18 = sbr.rel (0) target = $region17
    $region16: #{mlp_forward.1} parent=1 // pred_region
      _
    $region17: #{mlp_forward.1} parent=1 // pred_fallthru
      _
    // Predicated region
    $region18: #{mlp_forward.1} parent=1 // pred_check
      _
    $region19: #{mlp_forward.1} parent=1 // pred_check_branch
      %20 = sbr.rel (0) target = $region21
    $region20: #{mlp_forward.1} parent=1 // pred_region
      _
    $region21: #{mlp_forward.1} parent=1 // pred_fallthru
      _
    %v22 = vld [vmem:[%s0] sm:$0xf]
    %v23 = vld [vmem:[%s1] sm:$0xf]
    %v24 = vld [vmem:[%s1 + $0x4] sm:$0xf]
    %v25 = vld [vmem:[%s2] sm:$0x1]
    %v27 = vlaneseq
    %v28 = vshrl.u32 %v27, 7
    %v29 = vsub.s32 0, %v28
    %v30 = vrot.slane %v25, %v29
    %v34 = vunpack.c.l.b16 %v23
    %v35 = vunpack.c.l.b16 %v24
    %v36 = vpack.c.b16 %v35, %v34
    %vm38 = vcmask 130048
    %v40 = vsel %vm38, %v22, 0
    %42 = vmatprep.subr.bf16.mxu0 0
    %43 = vmatpush1.bf16.msra.mxu0 %v36
    %44 = vmatprep.subr.bf16.mxu0 0
    %45 = vmatpush1.bf16.msra.mxu0 0
    %46 = vmatprep.subr.bf16.mxu0 0
    %47 = vmatpush1.bf16.msra.mxu0 0
    %48 = vmatprep.subr.bf16.mxu0 0
    %49 = vmatpush1.bf16.msra.mxu0 0
    %50 = vmatprep.subr.bf16.mxu0 0
    %51 = vmatpush1.bf16.msra.mxu0 0
    %52 = vmatprep.subr.bf16.mxu0 0
    %53 = vmatpush1.bf16.msra.mxu0 0
    %54 = vmatprep.subr.bf16.mxu0 0
    %55 = vmatpush1.bf16.msra.mxu0 0
    %56 = vmatprep.subr.bf16.mxu0 0
    %57 = vmatpush1.bf16.msra.mxu0 0
    %58 = vmatprep.subr.bf16.mxu0 0
    %59 = vmatpush1.bf16.msra.mxu0 0
    %60 = vmatprep.subr.bf16.mxu0 0
    %61 = vmatpush1.bf16.msra.mxu0 0
    %62 = vmatprep.subr.bf16.mxu0 0
    %63 = vmatpush1.bf16.msra.mxu0 0
    %64 = vmatprep.subr.bf16.mxu0 0
    %65 = vmatpush1.bf16.msra.mxu0 0
    %66 = vmatprep.subr.bf16.mxu0 0
    %67 = vmatpush1.bf16.msra.mxu0 0
    %68 = vmatprep.subr.bf16.mxu0 0
    %69 = vmatpush1.bf16.msra.mxu0 0
    %70 = vmatprep.subr.bf16.mxu0 0
    %71 = vmatpush1.bf16.msra.mxu0 0
    %72 = vmatprep.subr.bf16.mxu0 0
    %73 = vmatpush1.bf16.msra.mxu0 0
    %74 = vmatprep.mubr.bf16.mxu0 0
    %75 = vmatmul.mubr.bf16.gmra.mrb[0].mxu0 %v40
    %v76 = vpop.f32.mrb[0].mxu0
    %v77 = vadd.f32 %v30, %v76
    %v78 = vpop.f32.mrb[0].mxu0
    %v79 = vpop.f32.mrb[0].mxu0
    %v80 = vpop.f32.mrb[0].mxu0
    %81 = vdwg.mxu0
    %v82 = vmax.f32 %v77, 0.0
    %v83 = vpack.c.bf16 %v82, %v82
    %v84 = vld [vmem:[%s3] sm:$0xf]
    %v85 = vld [vmem:[%s3 + $0x4] sm:$0xf]
    %v86 = vld [vmem:[%s3 + $0x8] sm:$0xf]
    %v87 = vld [vmem:[%s3 + $0xc] sm:$0xf]
    %v88 = vld [vmem:[%s3 + $0x10] sm:$0xf]
    %v89 = vld [vmem:[%s3 + $0x14] sm:$0xf]
    %v90 = vld [vmem:[%s3 + $0x18] sm:$0xf]
    %v91 = vld [vmem:[%s3 + $0x1c] sm:$0xf]
    %v92 = vld [vmem:[%s3 + $0x20] sm:$0xf]
    %v93 = vld [vmem:[%s3 + $0x24] sm:$0xf]
    %v94 = vld [vmem:[%s3 + $0x28] sm:$0xf]
    %v95 = vld [vmem:[%s3 + $0x2c] sm:$0xf]
    %v96 = vld [vmem:[%s3 + $0x30] sm:$0xf]
    %v97 = vld [vmem:[%s3 + $0x34] sm:$0xf]
    %v98 = vld [vmem:[%s3 + $0x38] sm:$0xf]
    %v99 = vld [vmem:[%s3 + $0x3c] sm:$0xf]
    %v100 = vld [vmem:[%s4] sm:$0x1]
    %v102 = vlaneseq
    %v103 = vshrl.u32 %v102, 7
    %v104 = vsub.s32 0, %v103
    %v105 = vrot.slane %v100, %v104
    %v123 = vunpack.c.l.b16 %v84
    %v124 = vunpack.c.l.b16 %v85
    %v125 = vunpack.c.l.b16 %v86
    %v126 = vunpack.c.l.b16 %v87
    %v127 = vunpack.c.l.b16 %v88
    %v128 = vunpack.c.l.b16 %v89
    %v129 = vunpack.c.l.b16 %v90
    %v130 = vunpack.c.l.b16 %v91
    %v131 = vunpack.c.l.b16 %v92
    %v132 = vunpack.c.l.b16 %v93
    %v133 = vunpack.c.l.b16 %v94
    %v134 = vunpack.c.l.b16 %v95
    %v135 = vunpack.c.l.b16 %v96
    %v136 = vunpack.c.l.b16 %v97
    %v137 = vunpack.c.l.b16 %v98
    %v138 = vunpack.c.l.b16 %v99
    %v139 = vpack.c.b16 %v124, %v123
    %v140 = vpack.c.b16 %v126, %v125
    %v141 = vpack.c.b16 %v128, %v127
    %v142 = vpack.c.b16 %v130, %v129
    %v143 = vpack.c.b16 %v132, %v131
    %v144 = vpack.c.b16 %v134, %v133
    %v145 = vpack.c.b16 %v136, %v135
    %v146 = vpack.c.b16 %v138, %v137
    %155 = vmatprep.subr.bf16.mxu0 0
    %156 = vmatpush1.bf16.msra.mxu0 %v139
    %157 = vmatprep.subr.bf16.mxu0 0
    %158 = vmatpush1.bf16.msra.mxu0 %v140
    %159 = vmatprep.subr.bf16.mxu0 0
    %160 = vmatpush1.bf16.msra.mxu0 %v141
    %161 = vmatprep.subr.bf16.mxu0 0
    %162 = vmatpush1.bf16.msra.mxu0 %v142
    %163 = vmatprep.subr.bf16.mxu0 0
    %164 = vmatpush1.bf16.msra.mxu0 %v143
    %165 = vmatprep.subr.bf16.mxu0 0
    %166 = vmatpush1.bf16.msra.mxu0 %v144
    %167 = vmatprep.subr.bf16.mxu0 0
    %168 = vmatpush1.bf16.msra.mxu0 %v145
    %169 = vmatprep.subr.bf16.mxu0 0
    %170 = vmatpush1.bf16.msra.mxu0 %v146
    %171 = vmatprep.subr.bf16.mxu0 0
    %172 = vmatpush1.bf16.msra.mxu0 0
    %173 = vmatprep.subr.bf16.mxu0 0
    %174 = vmatpush1.bf16.msra.mxu0 0
    %175 = vmatprep.subr.bf16.mxu0 0
    %176 = vmatpush1.bf16.msra.mxu0 0
    %177 = vmatprep.subr.bf16.mxu0 0
    %178 = vmatpush1.bf16.msra.mxu0 0
    %179 = vmatprep.subr.bf16.mxu0 0
    %180 = vmatpush1.bf16.msra.mxu0 0
    %181 = vmatprep.subr.bf16.mxu0 0
    %182 = vmatpush1.bf16.msra.mxu0 0
    %183 = vmatprep.subr.bf16.mxu0 0
    %184 = vmatpush1.bf16.msra.mxu0 0
    %185 = vmatprep.subr.bf16.mxu0 0
    %186 = vmatpush1.bf16.msra.mxu0 0
    %187 = vmatprep.mubr.bf16.mxu0 0
    %188 = vmatmul.mubr.bf16.gmra.mrb[0].mxu0 %v83
    %v189 = vpop.f32.mrb[0].mxu0
    %v190 = vadd.f32 %v105, %v189
    %v191 = vpop.f32.mrb[0].mxu0
    %v192 = vpop.f32.mrb[0].mxu0
    %v193 = vpop.f32.mrb[0].mxu0
    %194 = vdwg.mxu0
    %195 = vst [vmem:[#allocation2] sm:$0xff] %v190
    // Predicated region
    $region22: #{mlp_forward.1} parent=1 // pred_check
      _
    $region23: #{mlp_forward.1} parent=1 // pred_check_branch
      %197 = sbr.rel (0) target = $region25
    $region24: #{mlp_forward.1} parent=1 // pred_region
      %s199 = ssub.s32 128, 128
      %200 = vsyncadd [#allocation3], %s199
      %s202 = sshll.u32 [#allocation2], 4
      %s203 = int_to_ptr.vmem [resolvable:$true] %s202
      %205 = dma.vmem_to_hbm [thread:$0]  %s203, 128, %s5, [#allocation3]
    $region25: #{mlp_forward.1} parent=1 // pred_fallthru
      _
    // Predicated region
    $region26: #{mlp_forward.1} parent=1 // pred_check
      _
    $region27: #{mlp_forward.1} parent=1 // pred_check_branch
      %207 = sbr.rel (0) target = $region29
    $region28: #{mlp_forward.1} parent=1 // pred_region
      %208 = dma.done [#allocation3], 128
    $region29: #{mlp_forward.1} parent=1 // pred_fallthru
      _
    %209 = vsyncpa [#allocation3], 1

</llo_original>
